<compile_context>
chip_gen: v5e
topology: v5e:2x2
jax: 0.10.0
libtpu: 0.0.40
codegen_flags: <defaults>
</compile_context>

<pallas_src>
import jax
import jax.numpy as jnp
from jax.experimental import pallas as pl
from jax.experimental.pallas import tpu as pltpu

# ---- Model dims (PyTorch module defaults) ----
NUM_AUGS = 16          # aug vocab, padding_idx = NUM_AUGS - 1
NUM_CLS = 100
EMBED_DIM = 100
HIDDEN = 100

# ---- Lane/sublane-aligned padded dims used inside the kernel ----
K_PAD = 128            # NUM_AUGS + NUM_CLS = 116 -> 128 (single layer-1 contraction)
H_PAD = 128            # HIDDEN 100 -> 128


def _round_up(n, m):
    return ((n + m - 1) // m) * m


def _predictor_kernel(xt_ref, t1_ref, b1_ref, w2_ref, b2_ref, w3_ref, b3_ref,
                      w4_ref, b4_ref, o_ref):
    """One batch tile of the fused forward pass (batch on lanes).

    xt_ref : [4, TB] int32        rows = (aug1, aug2, aug3, cls)
    t1_ref : [H_PAD, K_PAD] f32   embedding tables folded through W1 (transposed)
    b1/b2/b3: [H_PAD, 1] f32      biases as columns (lane-broadcast)
    w2/w3  : [H_PAD, H_PAD] f32   layer weights stored [out, in]
    w4_ref : [H_PAD, 1] f32       output-layer weights as a column
    b4_ref : [1, 1] f32
    o_ref  : [1, TB] f32          lane-dense output row
    """
    xt = xt_ref[...]
    tb = xt.shape[1]

    # Counted one-hot over the concatenated (aug | cls) vocabulary, vocabulary
    # on sublanes, batch on lanes.  Aug indices hit rows [0, 16); the cls index
    # is shifted into [16, 116).  Summed as int32, single f32 cast at the end.
    iota = jax.lax.broadcasted_iota(jnp.int32, (K_PAD, tb), 0)
    oh = ((xt[0:1, :] == iota).astype(jnp.int32)
          + (xt[1:2, :] == iota).astype(jnp.int32)
          + (xt[2:3, :] == iota).astype(jnp.int32)
          + ((xt[3:4, :] + NUM_AUGS) == iota).astype(jnp.int32)
          ).astype(jnp.float32)

    # Layer 1: embedding lookups + Linear(200->100) fused into one K=128 matmul.
    h = jnp.dot(t1_ref[...], oh, preferred_element_type=jnp.float32) + b1_ref[...]
    h = jnp.maximum(h, 0.0)

    # Layers 2 and 3: Linear(100->100) + ReLU.
    h = jnp.dot(w2_ref[...], h, preferred_element_type=jnp.float32) + b2_ref[...]
    h = jnp.maximum(h, 0.0)
    h = jnp.dot(w3_ref[...], h, preferred_element_type=jnp.float32) + b3_ref[...]
    h = jnp.maximum(h, 0.0)

    # Output Linear(100->1): VPU multiply + sublane (XLU) reduction -> the
    # result is naturally a lane-dense [1, TB] row.
    o_ref[...] = jnp.sum(h * w4_ref[...], axis=0, keepdims=True) + b4_ref[...]


def init_params(key):
    """Unpadded, PyTorch-layout-equivalent params (Linear weights stored as [in, out])."""
    ks = jax.random.split(key, 12)
    scale = 0.1
    aug_table = scale * jax.random.normal(ks[0], (NUM_AUGS, EMBED_DIM), jnp.float32)
    # padding_idx = NUM_AUGS - 1 -> that embedding row is zero.
    aug_table = aug_table.at[NUM_AUGS - 1].set(0.0)
    cls_table = scale * jax.random.normal(ks[1], (NUM_CLS, EMBED_DIM), jnp.float32)

    w1 = scale * jax.random.normal(ks[2], (2 * EMBED_DIM, HIDDEN), jnp.float32)
    b1 = scale * jax.random.normal(ks[3], (1, HIDDEN), jnp.float32)
    w2 = scale * jax.random.normal(ks[4], (HIDDEN, HIDDEN), jnp.float32)
    b2 = scale * jax.random.normal(ks[5], (1, HIDDEN), jnp.float32)
    w3 = scale * jax.random.normal(ks[6], (HIDDEN, HIDDEN), jnp.float32)
    b3 = scale * jax.random.normal(ks[7], (1, HIDDEN), jnp.float32)
    w4 = scale * jax.random.normal(ks[8], (HIDDEN, 1), jnp.float32)
    b4 = scale * jax.random.normal(ks[9], (1, 1), jnp.float32)
    return dict(aug_table=aug_table, cls_table=cls_table,
                w1=w1, b1=b1, w2=w2, b2=b2, w3=w3, b3=b3, w4=w4, b4=b4)


def pack_params(params):
    """One-time offline fold + pad + transpose to the batch-on-lanes layout."""
    w1a = params["w1"][:EMBED_DIM]          # aug half of W1   [100, 100]
    w1b = params["w1"][EMBED_DIM:]          # cls half of W1   [100, 100]
    t_aug = params["aug_table"] @ w1a       # [16, 100] (padding row stays zero)
    t_cls = params["cls_table"] @ w1b       # [100, 100]

    t1 = jnp.zeros((K_PAD, H_PAD), jnp.float32)
    t1 = t1.at[:NUM_AUGS, :HIDDEN].set(t_aug)
    t1 = t1.at[NUM_AUGS:NUM_AUGS + NUM_CLS, :HIDDEN].set(t_cls)

    def pad2(a, r, c):
        return jnp.zeros((r, c), jnp.float32).at[:a.shape[0], :a.shape[1]].set(a)

    return dict(
        t1=t1.T,                                        # [H_PAD, K_PAD]
        b1=pad2(params["b1"].reshape(-1, 1), H_PAD, 1),
        w2=pad2(params["w2"].T, H_PAD, H_PAD),          # [out, in]
        b2=pad2(params["b2"].reshape(-1, 1), H_PAD, 1),
        w3=pad2(params["w3"].T, H_PAD, H_PAD),          # [out, in]
        b3=pad2(params["b3"].reshape(-1, 1), H_PAD, 1),
        w4=pad2(params["w4"], H_PAD, 1),                # [H_PAD, 1] column
        b4=params["b4"],                                # [1, 1]
    )


def neural_predictor_forward(x, packed, tb_max=2048):
    """x: [B, 4] int index rows -> [B, 1] float32."""
    B = x.shape[0]
    # Batch tile: multiple of 128 (lanes), large enough to amortize per-step
    # overhead, but <= ceil(B/2) rounded up so moderate B still produces >=2
    # parallel grid steps (v7x has 2 TensorCores).  tb_max=2048 keeps VMEM at
    # a few MiB -- safe for v5e/v6e/v7x scoped-VMEM budgets.
    half = _round_up(max((B + 1) // 2, 1), 128)
    TB = min(tb_max, half)
    B_pad = _round_up(B, TB)

    xi = x.astype(jnp.int32)
    if B_pad != B:
        # Pad with index-0 rows (valid indices); padded outputs are sliced off.
        xi = jnp.pad(xi, ((0, B_pad - B), (0, 0)))
    xt = xi.T                                  # [4, B_pad]: batch on lanes

    const = lambda i: (0, 0)                   # weights resident across the grid
    flops = 2 * B_pad * (K_PAD * H_PAD + 2 * H_PAD * H_PAD + H_PAD)
    bytes_accessed = int(xt.size * 4
                         + sum(int(v.size) for v in packed.values()) * 4
                         + B_pad * 4)

    out = pl.pallas_call(
        _predictor_kernel,
        out_shape=jax.ShapeDtypeStruct((1, B_pad), jnp.float32),
        grid=(B_pad // TB,),
        in_specs=[
            pl.BlockSpec((4, TB), lambda i: (0, i)),        # x^T (dense DMA)
            pl.BlockSpec((H_PAD, K_PAD), const),            # t1 (folded tables)
            pl.BlockSpec((H_PAD, 1), const),                # b1
            pl.BlockSpec((H_PAD, H_PAD), const),            # w2
            pl.BlockSpec((H_PAD, 1), const),                # b2
            pl.BlockSpec((H_PAD, H_PAD), const),            # w3
            pl.BlockSpec((H_PAD, 1), const),                # b3
            pl.BlockSpec((H_PAD, 1), const),                # w4 column
            pl.BlockSpec((1, 1), const),                    # b4
        ],
        out_specs=pl.BlockSpec((1, TB), lambda i: (0, i)),  # lane-dense row
        compiler_params=pltpu.CompilerParams(
            dimension_semantics=("parallel",),
            vmem_limit_bytes=32 * 1024 * 1024),
        cost_estimate=pl.CostEstimate(flops=flops, transcendentals=0,
                                      bytes_accessed=bytes_accessed),
    )(xt, packed["t1"], packed["b1"], packed["w2"], packed["b2"],
      packed["w3"], packed["b3"], packed["w4"], packed["b4"])
    return out.reshape(B_pad, 1)[:B]


def reference_forward(x, params):
    """Pure-JAX reference matching the PyTorch module (unpadded, unfused)."""
    aug_emb = (params["aug_table"][x[:, 0]]
               + params["aug_table"][x[:, 1]]
               + params["aug_table"][x[:, 2]])
    cls_emb = params["cls_table"][x[:, 3]]
    h = jnp.concatenate([aug_emb, cls_emb], axis=1)
    h = jnp.maximum(h @ params["w1"] + params["b1"], 0.0)
    h = jnp.maximum(h @ params["w2"] + params["b2"], 0.0)
    h = jnp.maximum(h @ params["w3"] + params["b3"], 0.0)
    return h @ params["w4"] + params["b4"]


if __name__ == "__main__":
    key = jax.random.PRNGKey(0)
    pkey, akey, ckey, a2key, c2key = jax.random.split(key, 5)
    params = init_params(pkey)
    packed = pack_params(params)

    # Small-shape check (B=8), exercising the padding_idx (zero-embedding) path.
    B = 8
    aug_idx = jax.random.randint(akey, (B, 3), 0, NUM_AUGS, dtype=jnp.int32)
    aug_idx = aug_idx.at[0, 2].set(NUM_AUGS - 1)
    cls_idx = jax.random.randint(ckey, (B, 1), 0, NUM_CLS, dtype=jnp.int32)
    x = jnp.concatenate([aug_idx, cls_idx], axis=1)   # [B, 4] int32

    y = jax.block_until_ready(neural_predictor_forward(x, packed))
    y_ref = reference_forward(x, params)
    assert y.shape == (B, 1)
    assert jnp.allclose(y, y_ref, atol=1e-3, rtol=1e-3), "mismatch vs reference (B=8)"

    # Multi-tile check: B=300 -> TB=256, grid=(2,), both grid steps exercised.
    B2 = 300
    aug2 = jax.random.randint(a2key, (B2, 3), 0, NUM_AUGS, dtype=jnp.int32)
    cls2 = jax.random.randint(c2key, (B2, 1), 0, NUM_CLS, dtype=jnp.int32)
    x2 = jnp.concatenate([aug2, cls2], axis=1)
    y2 = jax.block_until_ready(neural_predictor_forward(x2, packed))
    y2_ref = reference_forward(x2, params)
    assert y2.shape == (B2, 1)
    assert jnp.allclose(y2, y2_ref, atol=1e-3, rtol=1e-3), "mismatch vs reference (B=300)"

    print("KERNEL_OK")
</pallas_src>

<mosaic_0001>
module attributes {stable_mosaic.version = 11 : i64} {
  func.func @_predictor_kernel(%arg0: i32, %arg1: memref<4x128xi32, #tpu.memory_space<vmem>>, %arg2: memref<128x128xf32, #tpu.memory_space<vmem>>, %arg3: memref<128x1xf32, #tpu.memory_space<vmem>>, %arg4: memref<128x128xf32, #tpu.memory_space<vmem>>, %arg5: memref<128x1xf32, #tpu.memory_space<vmem>>, %arg6: memref<128x128xf32, #tpu.memory_space<vmem>>, %arg7: memref<128x1xf32, #tpu.memory_space<vmem>>, %arg8: memref<128x1xf32, #tpu.memory_space<vmem>>, %arg9: memref<1x1xf32, #tpu.memory_space<vmem>>, %arg10: memref<1x128xf32, #tpu.memory_space<vmem>>) attributes {dimension_semantics = [#tpu.dimension_semantics<parallel>], iteration_bounds = array<i64: 1>, scalar_prefetch = 0 : i64, scratch_operands = 0 : i64, tpu.core_type = #tpu.core_type<tc>, window_params = [{transform_indices = @transform_0, window_bounds = array<i64: 4, 128>}, {pipeline_mode = #tpu.pipeline_mode<synchronous>, transform_indices = @transform_1, window_bounds = array<i64: 128, 128>}, {pipeline_mode = #tpu.pipeline_mode<synchronous>, transform_indices = @transform_2, window_bounds = array<i64: 128, 1>}, {pipeline_mode = #tpu.pipeline_mode<synchronous>, transform_indices = @transform_3, window_bounds = array<i64: 128, 128>}, {pipeline_mode = #tpu.pipeline_mode<synchronous>, transform_indices = @transform_4, window_bounds = array<i64: 128, 1>}, {pipeline_mode = #tpu.pipeline_mode<synchronous>, transform_indices = @transform_5, window_bounds = array<i64: 128, 128>}, {pipeline_mode = #tpu.pipeline_mode<synchronous>, transform_indices = @transform_6, window_bounds = array<i64: 128, 1>}, {pipeline_mode = #tpu.pipeline_mode<synchronous>, transform_indices = @transform_7, window_bounds = array<i64: 128, 1>}, {pipeline_mode = #tpu.pipeline_mode<synchronous>, transform_indices = @transform_8, window_bounds = array<i64: 1, 1>}, {transform_indices = @transform_9, window_bounds = array<i64: 1, 128>}]} {
    %c0 = arith.constant 0 : index
    %c0_0 = arith.constant 0 : index
    %0 = vector.load %arg1[%c0, %c0_0] : memref<4x128xi32, #tpu.memory_space<vmem>>, vector<4x128xi32>
    %1 = tpu.iota {dimensions = array<i32: 0>} : vector<128x128xi32>
    %2 = vector.extract_strided_slice %0 {offsets = [0, 0], sizes = [1, 128], strides = [1, 1]} : vector<4x128xi32> to vector<1x128xi32>
    %3 = vector.broadcast %2 : vector<1x128xi32> to vector<128x128xi32>
    %4 = arith.cmpi eq, %3, %1 : vector<128x128xi32>
    %5 = arith.extui %4 : vector<128x128xi1> to vector<128x128xi32>
    %6 = vector.extract_strided_slice %0 {offsets = [1, 0], sizes = [1, 128], strides = [1, 1]} : vector<4x128xi32> to vector<1x128xi32>
    %7 = vector.broadcast %6 : vector<1x128xi32> to vector<128x128xi32>
    %8 = arith.cmpi eq, %7, %1 : vector<128x128xi32>
    %9 = arith.extui %8 : vector<128x128xi1> to vector<128x128xi32>
    %10 = arith.addi %5, %9 : vector<128x128xi32>
    %11 = vector.extract_strided_slice %0 {offsets = [2, 0], sizes = [1, 128], strides = [1, 1]} : vector<4x128xi32> to vector<1x128xi32>
    %12 = vector.broadcast %11 : vector<1x128xi32> to vector<128x128xi32>
    %13 = arith.cmpi eq, %12, %1 : vector<128x128xi32>
    %14 = arith.extui %13 : vector<128x128xi1> to vector<128x128xi32>
    %15 = arith.addi %10, %14 : vector<128x128xi32>
    %16 = vector.extract_strided_slice %0 {offsets = [3, 0], sizes = [1, 128], strides = [1, 1]} : vector<4x128xi32> to vector<1x128xi32>
    %c16_i32 = arith.constant 16 : i32
    %17 = vector.broadcast %c16_i32 : i32 to vector<1x128xi32>
    %18 = arith.addi %16, %17 : vector<1x128xi32>
    %19 = vector.broadcast %18 : vector<1x128xi32> to vector<128x128xi32>
    %20 = arith.cmpi eq, %19, %1 : vector<128x128xi32>
    %21 = arith.extui %20 : vector<128x128xi1> to vector<128x128xi32>
    %22 = arith.addi %15, %21 : vector<128x128xi32>
    %23 = arith.sitofp %22 : vector<128x128xi32> to vector<128x128xf32>
    %c0_1 = arith.constant 0 : index
    %c0_2 = arith.constant 0 : index
    %24 = vector.load %arg2[%c0_1, %c0_2] : memref<128x128xf32, #tpu.memory_space<vmem>>, vector<128x128xf32>
    %cst = arith.constant dense<0.000000e+00> : vector<128x128xf32>
    %25 = tpu.matmul %24, %23, %cst {dimension_numbers = #tpu.dot_dimension_numbers<[1], [0], [0], [1], [0, 0, 1, 1], [], []>} : vector<128x128xf32>, vector<128x128xf32>, vector<128x128xf32> -> vector<128x128xf32>
    %c0_3 = arith.constant 0 : index
    %c0_4 = arith.constant 0 : index
    %26 = vector.load %arg3[%c0_3, %c0_4] : memref<128x1xf32, #tpu.memory_space<vmem>>, vector<128x1xf32>
    %27 = vector.broadcast %26 : vector<128x1xf32> to vector<128x128xf32>
    %28 = arith.addf %25, %27 : vector<128x128xf32>
    %cst_5 = arith.constant 0.000000e+00 : f32
    %29 = vector.broadcast %cst_5 : f32 to vector<128x128xf32>
    %30 = arith.maximumf %28, %29 : vector<128x128xf32>
    %c0_6 = arith.constant 0 : index
    %c0_7 = arith.constant 0 : index
    %31 = vector.load %arg4[%c0_6, %c0_7] : memref<128x128xf32, #tpu.memory_space<vmem>>, vector<128x128xf32>
    %cst_8 = arith.constant dense<0.000000e+00> : vector<128x128xf32>
    %32 = tpu.matmul %31, %30, %cst_8 {dimension_numbers = #tpu.dot_dimension_numbers<[1], [0], [0], [1], [0, 0, 1, 1], [], []>} : vector<128x128xf32>, vector<128x128xf32>, vector<128x128xf32> -> vector<128x128xf32>
    %c0_9 = arith.constant 0 : index
    %c0_10 = arith.constant 0 : index
    %33 = vector.load %arg5[%c0_9, %c0_10] : memref<128x1xf32, #tpu.memory_space<vmem>>, vector<128x1xf32>
    %34 = vector.broadcast %33 : vector<128x1xf32> to vector<128x128xf32>
    %35 = arith.addf %32, %34 : vector<128x128xf32>
    %cst_11 = arith.constant 0.000000e+00 : f32
    %36 = vector.broadcast %cst_11 : f32 to vector<128x128xf32>
    %37 = arith.maximumf %35, %36 : vector<128x128xf32>
    %c0_12 = arith.constant 0 : index
    %c0_13 = arith.constant 0 : index
    %38 = vector.load %arg6[%c0_12, %c0_13] : memref<128x128xf32, #tpu.memory_space<vmem>>, vector<128x128xf32>
    %cst_14 = arith.constant dense<0.000000e+00> : vector<128x128xf32>
    %39 = tpu.matmul %38, %37, %cst_14 {dimension_numbers = #tpu.dot_dimension_numbers<[1], [0], [0], [1], [0, 0, 1, 1], [], []>} : vector<128x128xf32>, vector<128x128xf32>, vector<128x128xf32> -> vector<128x128xf32>
    %c0_15 = arith.constant 0 : index
    %c0_16 = arith.constant 0 : index
    %40 = vector.load %arg7[%c0_15, %c0_16] : memref<128x1xf32, #tpu.memory_space<vmem>>, vector<128x1xf32>
    %41 = vector.broadcast %40 : vector<128x1xf32> to vector<128x128xf32>
    %42 = arith.addf %39, %41 : vector<128x128xf32>
    %cst_17 = arith.constant 0.000000e+00 : f32
    %43 = vector.broadcast %cst_17 : f32 to vector<128x128xf32>
    %44 = arith.maximumf %42, %43 : vector<128x128xf32>
    %c0_18 = arith.constant 0 : index
    %c0_19 = arith.constant 0 : index
    %45 = vector.load %arg8[%c0_18, %c0_19] : memref<128x1xf32, #tpu.memory_space<vmem>>, vector<128x1xf32>
    %46 = vector.broadcast %45 : vector<128x1xf32> to vector<128x128xf32>
    %47 = arith.mulf %44, %46 : vector<128x128xf32>
    %cst_20 = arith.constant dense<0.000000e+00> : vector<128xf32>
    %48 = vector.multi_reduction <add>, %47, %cst_20 [0] : vector<128x128xf32> to vector<128xf32>
    %49 = vector.shape_cast %48 : vector<128xf32> to vector<1x128xf32>
    %c0_21 = arith.constant 0 : index
    %c0_22 = arith.constant 0 : index
    %50 = vector.load %arg9[%c0_21, %c0_22] : memref<1x1xf32, #tpu.memory_space<vmem>>, vector<1x1xf32>
    %51 = vector.broadcast %50 : vector<1x1xf32> to vector<1x128xf32>
    %52 = arith.addf %49, %51 : vector<1x128xf32>
    %c0_23 = arith.constant 0 : index
    %c0_24 = arith.constant 0 : index
    %53 = vector.load %arg10[%c0_23, %c0_24] : memref<1x128xf32, #tpu.memory_space<vmem>>, vector<1x128xf32>
    tpu.vector_store %arg10[%c0_23, %c0_24], %52 {strides = array<i32>} : memref<1x128xf32, #tpu.memory_space<vmem>>, vector<1x128xf32>,
    return
  }
  func.func @transform_0(%arg0: i32) -> (i32, i32) {
    %c0_i32 = arith.constant 0 : i32
    %c0_i32_0 = arith.constant 0 : i32
    return %c0_i32, %arg0 : i32, i32
  }
  func.func @transform_1(%arg0: i32) -> (i32, i32) {
    %c0_i32 = arith.constant 0 : i32
    %c0_i32_0 = arith.constant 0 : i32
    %c0_i32_1 = arith.constant 0 : i32
    return %c0_i32, %c0_i32_0 : i32, i32
  }
  func.func @transform_2(%arg0: i32) -> (i32, i32) {
    %c0_i32 = arith.constant 0 : i32
    %c0_i32_0 = arith.constant 0 : i32
    %c0_i32_1 = arith.constant 0 : i32
    return %c0_i32, %c0_i32_0 : i32, i32
  }
  func.func @transform_3(%arg0: i32) -> (i32, i32) {
    %c0_i32 = arith.constant 0 : i32
    %c0_i32_0 = arith.constant 0 : i32
    %c0_i32_1 = arith.constant 0 : i32
    return %c0_i32, %c0_i32_0 : i32, i32
  }
  func.func @transform_4(%arg0: i32) -> (i32, i32) {
    %c0_i32 = arith.constant 0 : i32
    %c0_i32_0 = arith.constant 0 : i32
    %c0_i32_1 = arith.constant 0 : i32
    return %c0_i32, %c0_i32_0 : i32, i32
  }
  func.func @transform_5(%arg0: i32) -> (i32, i32) {
    %c0_i32 = arith.constant 0 : i32
    %c0_i32_0 = arith.constant 0 : i32
    %c0_i32_1 = arith.constant 0 : i32
    return %c0_i32, %c0_i32_0 : i32, i32
  }
  func.func @transform_6(%arg0: i32) -> (i32, i32) {
    %c0_i32 = arith.constant 0 : i32
    %c0_i32_0 = arith.constant 0 : i32
    %c0_i32_1 = arith.constant 0 : i32
    return %c0_i32, %c0_i32_0 : i32, i32
  }
  func.func @transform_7(%arg0: i32) -> (i32, i32) {
    %c0_i32 = arith.constant 0 : i32
    %c0_i32_0 = arith.constant 0 : i32
    %c0_i32_1 = arith.constant 0 : i32
    return %c0_i32, %c0_i32_0 : i32, i32
  }
  func.func @transform_8(%arg0: i32) -> (i32, i32) {
    %c0_i32 = arith.constant 0 : i32
    %c0_i32_0 = arith.constant 0 : i32
    %c0_i32_1 = arith.constant 0 : i32
    return %c0_i32, %c0_i32_0 : i32, i32
  }
  func.func @transform_9(%arg0: i32) -> (i32, i32) {
    %c0_i32 = arith.constant 0 : i32
    %c0_i32_0 = arith.constant 0 : i32
    return %c0_i32, %arg0 : i32, i32
  }
}

</mosaic_0001>

<llo_original>
// kernel: tpu_custom_call.1
$region0: #{tpu_custom_call.1}
  #allocation0 [shape = 'u32[]', space=smem, size = 0x4, offset = 0x4, fixed_abs, tag = 'smem constant byte address 0x4 - core index']
  #allocation1 [shape = 'u32[72,128]{1,0:T(1,128)}', space=vmem, size = 0x9000, scoped, tag = 'internal scratch']
  #allocation2 [shape = 'f32[1,1]{1,0:T(1,128)S(1)}', space=vmem, size = 0x200, scoped, tag = 'scoped memory for tpu_custom_call.1']
  %s0 = inlined_call_operand.vmem [shape: s32[4,128], index: 0, kind: input, shape index: {}]
  %s1 = inlined_call_operand.vmem [shape: f32[128,128], index: 1, kind: input, shape index: {}]
  %s2 = inlined_call_operand.vmem [shape: f32[128,1], index: 2, kind: input, shape index: {}]
  %s3 = inlined_call_operand.vmem [shape: f32[128,128], index: 3, kind: input, shape index: {}]
  %s4 = inlined_call_operand.vmem [shape: f32[128,1], index: 4, kind: input, shape index: {}]
  %s5 = inlined_call_operand.vmem [shape: f32[128,128], index: 5, kind: input, shape index: {}]
  %s6 = inlined_call_operand.vmem [shape: f32[128,1], index: 6, kind: input, shape index: {}]
  %s7 = inlined_call_operand.vmem [shape: f32[128,1], index: 7, kind: input, shape index: {}]
  %s8 = inlined_call_operand.<no memory space> [shape: f32[1,1], index: 8, kind: input, shape index: {}]
  %s9 = inlined_call_operand.hbm [shape: f32[1,128], index: 9, kind: output, shape index: {}]
  %s10 = sld [smem:[#allocation0]]
  $region46: #{tpu_custom_call.1} parent=0
    _
  %s12 = ssub.s32 1, %s10
  %s13 = scalar_select 0, %s12, %s10
  %v14 = vstv %s8
  %15 = vst [vmem:[#allocation2] sm:$0x1] %v14
  $region1: #{tpu_custom_call.1} parent=0
    #allocation3 [shape = 'u8[512]{0}', space=vmem, size = 0x400, scoped, tag = 'output window, operand 0, single buffered']
    #allocation4 [shape = 's32[1]{0}', space=sflag, size = 0x4, scoped, tag = 'scoped memory for tpu_custom_call.1']
    %16 = vsyncpa [#allocation4], 0
    // Predicated region
    $region2: #{tpu_custom_call.1} parent=1 // pred_check
      _
    $region3: #{tpu_custom_call.1} parent=1 // pred_check_branch
      %18 = sbr.rel (0) target = $region5
    $region4: #{tpu_custom_call.1} parent=1 // pred_region
      _
    $region5: #{tpu_custom_call.1} parent=1 // pred_fallthru
      _
    // Predicated region
    $region6: #{tpu_custom_call.1} parent=1 // pred_check
      _
    $region7: #{tpu_custom_call.1} parent=1 // pred_check_branch
      %20 = sbr.rel (0) target = $region9
    $region8: #{tpu_custom_call.1} parent=1 // pred_region
      _
    $region9: #{tpu_custom_call.1} parent=1 // pred_fallthru
      _
    // Predicated region
    $region10: #{tpu_custom_call.1} parent=1 // pred_check
      _
    $region11: #{tpu_custom_call.1} parent=1 // pred_check_branch
      %22 = sbr.rel (0) target = $region13
    $region12: #{tpu_custom_call.1} parent=1 // pred_region
      _
    $region13: #{tpu_custom_call.1} parent=1 // pred_fallthru
      _
    // Predicated region
    $region14: #{tpu_custom_call.1} parent=1 // pred_check
      _
    $region15: #{tpu_custom_call.1} parent=1 // pred_check_branch
      %24 = sbr.rel (0) target = $region17
    $region16: #{tpu_custom_call.1} parent=1 // pred_region
      _
    $region17: #{tpu_custom_call.1} parent=1 // pred_fallthru
      _
    // Predicated region
    $region18: #{tpu_custom_call.1} parent=1 // pred_check
      _
    $region19: #{tpu_custom_call.1} parent=1 // pred_check_branch
      %26 = sbr.rel (0) target = $region21
    $region20: #{tpu_custom_call.1} parent=1 // pred_region
      _
    $region21: #{tpu_custom_call.1} parent=1 // pred_fallthru
      _
    // Predicated region
    $region22: #{tpu_custom_call.1} parent=1 // pred_check
      _
    $region23: #{tpu_custom_call.1} parent=1 // pred_check_branch
      %28 = sbr.rel (0) target = $region25
    $region24: #{tpu_custom_call.1} parent=1 // pred_region
      _
    $region25: #{tpu_custom_call.1} parent=1 // pred_fallthru
      _
    // Predicated region
    $region26: #{tpu_custom_call.1} parent=1 // pred_check
      _
    $region27: #{tpu_custom_call.1} parent=1 // pred_check_branch
      %30 = sbr.rel (0) target = $region29
    $region28: #{tpu_custom_call.1} parent=1 // pred_region
      _
    $region29: #{tpu_custom_call.1} parent=1 // pred_fallthru
      _
    // Predicated region
    $region30: #{tpu_custom_call.1} parent=1 // pred_check
      _
    $region31: #{tpu_custom_call.1} parent=1 // pred_check_branch
      %32 = sbr.rel (0) target = $region33
    $region32: #{tpu_custom_call.1} parent=1 // pred_region
      _
    $region33: #{tpu_custom_call.1} parent=1 // pred_fallthru
      _
    // Predicated region
    $region34: #{tpu_custom_call.1} parent=1 // pred_check
      _
    $region35: #{tpu_custom_call.1} parent=1 // pred_check_branch
      %34 = sbr.rel (0) target = $region37
    $region36: #{tpu_custom_call.1} parent=1 // pred_region
      _
    $region37: #{tpu_custom_call.1} parent=1 // pred_fallthru
      _
    %v35 = vld [vmem:[%s0] sm:$0xf]
    %v36 = vlaneseq
    %v37 = vshrl.u32 %v36, 7
    %v38 = vadd.s32 %v37, 8
    %v39 = vadd.s32 %v37, 16
    %v40 = vadd.s32 %v37, 24
    %v41 = vadd.s32 %v37, 32
    %v42 = vadd.s32 %v37, 40
    %v43 = vadd.s32 %v37, 48
    %v44 = vadd.s32 %v37, 56
    %v45 = vadd.s32 %v37, 64
    %v46 = vadd.s32 %v37, 72
    %v47 = vadd.s32 %v37, 80
    %v48 = vadd.s32 %v37, 88
    %v49 = vadd.s32 %v37, 96
    %v50 = vadd.s32 %v37, 104
    %v51 = vadd.s32 %v37, 112
    %v52 = vadd.s32 %v37, 120
    %v53 = vperm.slane %v35, 0
    %vm54 = vcmp.eq.s32.totalorder %v53, %v37
    %vm55 = vcmp.eq.s32.totalorder %v53, %v38
    %vm56 = vcmp.eq.s32.totalorder %v53, %v39
    %vm57 = vcmp.eq.s32.totalorder %v53, %v40
    %vm58 = vcmp.eq.s32.totalorder %v53, %v41
    %vm59 = vcmp.eq.s32.totalorder %v53, %v42
    %vm60 = vcmp.eq.s32.totalorder %v53, %v43
    %vm61 = vcmp.eq.s32.totalorder %v53, %v44
    %vm62 = vcmp.eq.s32.totalorder %v53, %v45
    %vm63 = vcmp.eq.s32.totalorder %v53, %v46
    %vm64 = vcmp.eq.s32.totalorder %v53, %v47
    %vm65 = vcmp.eq.s32.totalorder %v53, %v48
    %vm66 = vcmp.eq.s32.totalorder %v53, %v49
    %vm67 = vcmp.eq.s32.totalorder %v53, %v50
    %vm68 = vcmp.eq.s32.totalorder %v53, %v51
    %vm69 = vcmp.eq.s32.totalorder %v53, %v52
    %v70 = vsel %vm54, 1, 0
    %v71 = vsel %vm55, 1, 0
    %v72 = vsel %vm56, 1, 0
    %v73 = vsel %vm57, 1, 0
    %v74 = vsel %vm58, 1, 0
    %v75 = vsel %vm59, 1, 0
    %v76 = vsel %vm60, 1, 0
    %v77 = vsel %vm61, 1, 0
    %v78 = vsel %vm62, 1, 0
    %v79 = vsel %vm63, 1, 0
    %v80 = vsel %vm64, 1, 0
    %v81 = vsel %vm65, 1, 0
    %v82 = vsel %vm66, 1, 0
    %v83 = vsel %vm67, 1, 0
    %v84 = vsel %vm68, 1, 0
    %v85 = vsel %vm69, 1, 0
    %v86 = vperm.slane %v35, 1
    %vm87 = vcmp.eq.s32.totalorder %v86, %v37
    %vm88 = vcmp.eq.s32.totalorder %v86, %v38
    %vm89 = vcmp.eq.s32.totalorder %v86, %v39
    %vm90 = vcmp.eq.s32.totalorder %v86, %v40
    %vm91 = vcmp.eq.s32.totalorder %v86, %v41
    %vm92 = vcmp.eq.s32.totalorder %v86, %v42
    %vm93 = vcmp.eq.s32.totalorder %v86, %v43
    %vm94 = vcmp.eq.s32.totalorder %v86, %v44
    %vm95 = vcmp.eq.s32.totalorder %v86, %v45
    %vm96 = vcmp.eq.s32.totalorder %v86, %v46
    %vm97 = vcmp.eq.s32.totalorder %v86, %v47
    %vm98 = vcmp.eq.s32.totalorder %v86, %v48
    %vm99 = vcmp.eq.s32.totalorder %v86, %v49
    %vm100 = vcmp.eq.s32.totalorder %v86, %v50
    %vm101 = vcmp.eq.s32.totalorder %v86, %v51
    %vm102 = vcmp.eq.s32.totalorder %v86, %v52
    %v103 = vsel %vm87, 1, 0
    %v104 = vsel %vm88, 1, 0
    %v105 = vsel %vm89, 1, 0
    %v106 = vsel %vm90, 1, 0
    %v107 = vsel %vm91, 1, 0
    %v108 = vsel %vm92, 1, 0
    %v109 = vsel %vm93, 1, 0
    %v110 = vsel %vm94, 1, 0
    %v111 = vsel %vm95, 1, 0
    %v112 = vsel %vm96, 1, 0
    %v113 = vsel %vm97, 1, 0
    %v114 = vsel %vm98, 1, 0
    %v115 = vsel %vm99, 1, 0
    %v116 = vsel %vm100, 1, 0
    %v117 = vsel %vm101, 1, 0
    %v118 = vsel %vm102, 1, 0
    %v119 = vadd.s32 %v70, %v103
    %v120 = vadd.s32 %v71, %v104
    %v121 = vadd.s32 %v72, %v105
    %v122 = vadd.s32 %v73, %v106
    %v123 = vadd.s32 %v74, %v107
    %v124 = vadd.s32 %v75, %v108
    %v125 = vadd.s32 %v76, %v109
    %v126 = vadd.s32 %v77, %v110
    %v127 = vadd.s32 %v78, %v111
    %v128 = vadd.s32 %v79, %v112
    %v129 = vadd.s32 %v80, %v113
    %v130 = vadd.s32 %v81, %v114
    %v131 = vadd.s32 %v82, %v115
    %v132 = vadd.s32 %v83, %v116
    %v133 = vadd.s32 %v84, %v117
    %v134 = vadd.s32 %v85, %v118
    %v135 = vperm.slane %v35, 2
    %vm136 = vcmp.eq.s32.totalorder %v135, %v37
    %vm137 = vcmp.eq.s32.totalorder %v135, %v38
    %vm138 = vcmp.eq.s32.totalorder %v135, %v39
    %vm139 = vcmp.eq.s32.totalorder %v135, %v40
    %vm140 = vcmp.eq.s32.totalorder %v135, %v41
    %vm141 = vcmp.eq.s32.totalorder %v135, %v42
    %vm142 = vcmp.eq.s32.totalorder %v135, %v43
    %vm143 = vcmp.eq.s32.totalorder %v135, %v44
    %vm144 = vcmp.eq.s32.totalorder %v135, %v45
    %vm145 = vcmp.eq.s32.totalorder %v135, %v46
    %vm146 = vcmp.eq.s32.totalorder %v135, %v47
    %vm147 = vcmp.eq.s32.totalorder %v135, %v48
    %vm148 = vcmp.eq.s32.totalorder %v135, %v49
    %vm149 = vcmp.eq.s32.totalorder %v135, %v50
    %vm150 = vcmp.eq.s32.totalorder %v135, %v51
    %vm151 = vcmp.eq.s32.totalorder %v135, %v52
    %v152 = vsel %vm136, 1, 0
    %v153 = vsel %vm137, 1, 0
    %v154 = vsel %vm138, 1, 0
    %v155 = vsel %vm139, 1, 0
    %v156 = vsel %vm140, 1, 0
    %v157 = vsel %vm141, 1, 0
    %v158 = vsel %vm142, 1, 0
    %v159 = vsel %vm143, 1, 0
    %v160 = vsel %vm144, 1, 0
    %v161 = vsel %vm145, 1, 0
    %v162 = vsel %vm146, 1, 0
    %v163 = vsel %vm147, 1, 0
    %v164 = vsel %vm148, 1, 0
    %v165 = vsel %vm149, 1, 0
    %v166 = vsel %vm150, 1, 0
    %v167 = vsel %vm151, 1, 0
    %v168 = vadd.s32 %v119, %v152
    %v169 = vadd.s32 %v120, %v153
    %v170 = vadd.s32 %v121, %v154
    %v171 = vadd.s32 %v122, %v155
    %v172 = vadd.s32 %v123, %v156
    %v173 = vadd.s32 %v124, %v157
    %v174 = vadd.s32 %v125, %v158
    %v175 = vadd.s32 %v126, %v159
    %v176 = vadd.s32 %v127, %v160
    %v177 = vadd.s32 %v128, %v161
    %v178 = vadd.s32 %v129, %v162
    %v179 = vadd.s32 %v130, %v163
    %v180 = vadd.s32 %v131, %v164
    %v181 = vadd.s32 %v132, %v165
    %v182 = vadd.s32 %v133, %v166
    %v183 = vadd.s32 %v134, %v167
    %v184 = vadd.s32 %v35, 16
    %v185 = vperm.slane %v184, 3
    %vm186 = vcmp.eq.s32.totalorder %v185, %v37
    %vm187 = vcmp.eq.s32.totalorder %v185, %v38
    %vm188 = vcmp.eq.s32.totalorder %v185, %v39
    %vm189 = vcmp.eq.s32.totalorder %v185, %v40
    %vm190 = vcmp.eq.s32.totalorder %v185, %v41
    %vm191 = vcmp.eq.s32.totalorder %v185, %v42
    %vm192 = vcmp.eq.s32.totalorder %v185, %v43
    %vm193 = vcmp.eq.s32.totalorder %v185, %v44
    %vm194 = vcmp.eq.s32.totalorder %v185, %v45
    %vm195 = vcmp.eq.s32.totalorder %v185, %v46
    %vm196 = vcmp.eq.s32.totalorder %v185, %v47
    %vm197 = vcmp.eq.s32.totalorder %v185, %v48
    %vm198 = vcmp.eq.s32.totalorder %v185, %v49
    %vm199 = vcmp.eq.s32.totalorder %v185, %v50
    %vm200 = vcmp.eq.s32.totalorder %v185, %v51
    %vm201 = vcmp.eq.s32.totalorder %v185, %v52
    %v202 = vsel %vm186, 1, 0
    %v203 = vsel %vm187, 1, 0
    %v204 = vsel %vm188, 1, 0
    %v205 = vsel %vm189, 1, 0
    %v206 = vsel %vm190, 1, 0
    %v207 = vsel %vm191, 1, 0
    %v208 = vsel %vm192, 1, 0
    %v209 = vsel %vm193, 1, 0
    %v210 = vsel %vm194, 1, 0
    %v211 = vsel %vm195, 1, 0
    %v212 = vsel %vm196, 1, 0
    %v213 = vsel %vm197, 1, 0
    %v214 = vsel %vm198, 1, 0
    %v215 = vsel %vm199, 1, 0
    %v216 = vsel %vm200, 1, 0
    %v217 = vsel %vm201, 1, 0
    %v218 = vadd.s32 %v168, %v202
    %v219 = vadd.s32 %v169, %v203
    %v220 = vadd.s32 %v170, %v204
    %v221 = vadd.s32 %v171, %v205
    %v222 = vadd.s32 %v172, %v206
    %v223 = vadd.s32 %v173, %v207
    %v224 = vadd.s32 %v174, %v208
    %v225 = vadd.s32 %v175, %v209
    %v226 = vadd.s32 %v176, %v210
    %v227 = vadd.s32 %v177, %v211
    %v228 = vadd.s32 %v178, %v212
    %v229 = vadd.s32 %v179, %v213
    %v230 = vadd.s32 %v180, %v214
    %v231 = vadd.s32 %v181, %v215
    %v232 = vadd.s32 %v182, %v216
    %v233 = vadd.s32 %v183, %v217
    %v234 = vcvt.s32.f32 %v218
    %v235 = vcvt.s32.f32 %v219
    %v236 = vcvt.s32.f32 %v220
    %v237 = vcvt.s32.f32 %v221
    %v238 = vcvt.s32.f32 %v222
    %v239 = vcvt.s32.f32 %v223
    %v240 = vcvt.s32.f32 %v224
    %v241 = vcvt.s32.f32 %v225
    %v242 = vcvt.s32.f32 %v226
    %v243 = vcvt.s32.f32 %v227
    %v244 = vcvt.s32.f32 %v228
    %v245 = vcvt.s32.f32 %v229
    %v246 = vcvt.s32.f32 %v230
    %v247 = vcvt.s32.f32 %v231
    %v248 = vcvt.s32.f32 %v232
    %v249 = vcvt.s32.f32 %v233
    %v250 = vld [vmem:[%s1] sm:$0xff]
    %v251 = vld [vmem:[%s1 + $0x8] sm:$0xff]
    %v252 = vld [vmem:[%s1 + $0x10] sm:$0xff]
    %v253 = vld [vmem:[%s1 + $0x18] sm:$0xff]
    %v254 = vld [vmem:[%s1 + $0x20] sm:$0xff]
    %v255 = vld [vmem:[%s1 + $0x28] sm:$0xff]
    %v256 = vld [vmem:[%s1 + $0x30] sm:$0xff]
    %v257 = vld [vmem:[%s1 + $0x38] sm:$0xff]
    %v258 = vld [vmem:[%s1 + $0x40] sm:$0xff]
    %v259 = vld [vmem:[%s1 + $0x48] sm:$0xff]
    %v260 = vld [vmem:[%s1 + $0x50] sm:$0xff]
    %v261 = vld [vmem:[%s1 + $0x58] sm:$0xff]
    %v262 = vld [vmem:[%s1 + $0x60] sm:$0xff]
    %v263 = vld [vmem:[%s1 + $0x68] sm:$0xff]
    %v264 = vld [vmem:[%s1 + $0x70] sm:$0xff]
    %v265 = vld [vmem:[%s1 + $0x78] sm:$0xff]
    %v266 = vld [vmem:[%s2] sm:$0xff]
    %v267 = vld [vmem:[%s2 + $0x8] sm:$0xff]
    %v268 = vld [vmem:[%s2 + $0x10] sm:$0xff]
    %v269 = vld [vmem:[%s2 + $0x18] sm:$0xff]
    %v270 = vld [vmem:[%s2 + $0x20] sm:$0xff]
    %v271 = vld [vmem:[%s2 + $0x28] sm:$0xff]
    %v272 = vld [vmem:[%s2 + $0x30] sm:$0xff]
    %v273 = vld [vmem:[%s2 + $0x38] sm:$0xff]
    %v274 = vld [vmem:[%s2 + $0x40] sm:$0xff]
    %v275 = vld [vmem:[%s2 + $0x48] sm:$0xff]
    %v276 = vld [vmem:[%s2 + $0x50] sm:$0xff]
    %v277 = vld [vmem:[%s2 + $0x58] sm:$0xff]
    %v278 = vld [vmem:[%s2 + $0x60] sm:$0xff]
    %v279 = vld [vmem:[%s2 + $0x68] sm:$0xff]
    %v280 = vld [vmem:[%s2 + $0x70] sm:$0xff]
    %v281 = vld [vmem:[%s2 + $0x78] sm:$0xff]
    %283 = vset.pattern.permute.xlu0 0
    %284 = vperm.xlu0 %283, %v266
    %v285 = vpop.permute.xlu0 %284
    %288 = vset.pattern.permute.xlu0 0
    %289 = vperm.xlu0 %288, %v267
    %v290 = vpop.permute.xlu0 %289
    %293 = vset.pattern.permute.xlu0 0
    %294 = vperm.xlu0 %293, %v268
    %v295 = vpop.permute.xlu0 %294
    %298 = vset.pattern.permute.xlu0 0
    %299 = vperm.xlu0 %298, %v269
    %v300 = vpop.permute.xlu0 %299
    %303 = vset.pattern.permute.xlu0 0
    %304 = vperm.xlu0 %303, %v270
    %v305 = vpop.permute.xlu0 %304
    %308 = vset.pattern.permute.xlu0 0
    %309 = vperm.xlu0 %308, %v271
    %v310 = vpop.permute.xlu0 %309
    %313 = vset.pattern.permute.xlu0 0
    %314 = vperm.xlu0 %313, %v272
    %v315 = vpop.permute.xlu0 %314
    %318 = vset.pattern.permute.xlu0 0
    %319 = vperm.xlu0 %318, %v273
    %v320 = vpop.permute.xlu0 %319
    %323 = vset.pattern.permute.xlu0 0
    %324 = vperm.xlu0 %323, %v274
    %v325 = vpop.permute.xlu0 %324
    %328 = vset.pattern.permute.xlu0 0
    %329 = vperm.xlu0 %328, %v275
    %v330 = vpop.permute.xlu0 %329
    %333 = vset.pattern.permute.xlu0 0
    %334 = vperm.xlu0 %333, %v276
    %v335 = vpop.permute.xlu0 %334
    %338 = vset.pattern.permute.xlu0 0
    %339 = vperm.xlu0 %338, %v277
    %v340 = vpop.permute.xlu0 %339
    %343 = vset.pattern.permute.xlu0 0
    %344 = vperm.xlu0 %343, %v278
    %v345 = vpop.permute.xlu0 %344
    %348 = vset.pattern.permute.xlu0 0
    %349 = vperm.xlu0 %348, %v279
    %v350 = vpop.permute.xlu0 %349
    %353 = vset.pattern.permute.xlu0 0
    %354 = vperm.xlu0 %353, %v280
    %v355 = vpop.permute.xlu0 %354
    %358 = vset.pattern.permute.xlu0 0
    %359 = vperm.xlu0 %358, %v281
    %v360 = vpop.permute.xlu0 %359
    %362 = vmatpush.msra.mxu0 %v249
    %363 = vmatpush.msra.mxu0 %v248
    %364 = vmatpush.msra.mxu0 %v247
    %365 = vmatpush.msra.mxu0 %v246
    %366 = vmatpush.msra.mxu0 %v245
    %367 = vmatpush.msra.mxu0 %v244
    %368 = vmatpush.msra.mxu0 %v243
    %369 = vmatpush.msra.mxu0 %v242
    %370 = vmatpush.msra.mxu0 %v241
    %371 = vmatpush.msra.mxu0 %v240
    %372 = vmatpush.msra.mxu0 %v239
    %373 = vmatpush.msra.mxu0 %v238
    %374 = vmatpush.msra.mxu0 %v237
    %375 = vmatpush.msra.mxu0 %v236
    %376 = vmatpush.msra.mxu0 %v235
    %377 = vmatpush.msra.mxu0 %v234
    %378 = vmatmul.f32.gmra.mxu0 %v250
    %v379 = vpop.f32.mrf.mxu0
    %v380 = vadd.f32 %v285, %v379
    %381 = vmatmul.f32.gmra.mxu0 %v251
    %v382 = vpop.f32.mrf.mxu0
    %v383 = vadd.f32 %v290, %v382
    %384 = vmatmul.f32.gmra.mxu0 %v252
    %v385 = vpop.f32.mrf.mxu0
    %v386 = vadd.f32 %v295, %v385
    %387 = vmatmul.f32.gmra.mxu0 %v253
    %v388 = vpop.f32.mrf.mxu0
    %v389 = vadd.f32 %v300, %v388
    %390 = vmatmul.f32.gmra.mxu0 %v254
    %v391 = vpop.f32.mrf.mxu0
    %v392 = vadd.f32 %v305, %v391
    %393 = vmatmul.f32.gmra.mxu0 %v255
    %v394 = vpop.f32.mrf.mxu0
    %v395 = vadd.f32 %v310, %v394
    %396 = vmatmul.f32.gmra.mxu0 %v256
    %v397 = vpop.f32.mrf.mxu0
    %v398 = vadd.f32 %v315, %v397
    %399 = vmatmul.f32.gmra.mxu0 %v257
    %v400 = vpop.f32.mrf.mxu0
    %v401 = vadd.f32 %v320, %v400
    %402 = vmatmul.f32.gmra.mxu0 %v258
    %v403 = vpop.f32.mrf.mxu0
    %v404 = vadd.f32 %v325, %v403
    %405 = vmatmul.f32.gmra.mxu0 %v259
    %v406 = vpop.f32.mrf.mxu0
    %v407 = vadd.f32 %v330, %v406
    %408 = vmatmul.f32.gmra.mxu0 %v260
    %v409 = vpop.f32.mrf.mxu0
    %v410 = vadd.f32 %v335, %v409
    %411 = vmatmul.f32.gmra.mxu0 %v261
    %v412 = vpop.f32.mrf.mxu0
    %v413 = vadd.f32 %v340, %v412
    %414 = vmatmul.f32.gmra.mxu0 %v262
    %v415 = vpop.f32.mrf.mxu0
    %v416 = vadd.f32 %v345, %v415
    %417 = vmatmul.f32.gmra.mxu0 %v263
    %v418 = vpop.f32.mrf.mxu0
    %v419 = vadd.f32 %v350, %v418
    %420 = vmatmul.f32.gmra.mxu0 %v264
    %v421 = vpop.f32.mrf.mxu0
    %v422 = vadd.f32 %v355, %v421
    %423 = vmatmul.f32.gmra.mxu0 %v265
    %v424 = vpop.f32.mrf.mxu0
    %v425 = vadd.f32 %v360, %v424
    %426 = vdwg.mxu0
    %v427 = vmax.f32 %v380, 0.0
    %v428 = vmax.f32 %v383, 0.0
    %v429 = vmax.f32 %v386, 0.0
    %v430 = vmax.f32 %v389, 0.0
    %v431 = vmax.f32 %v392, 0.0
    %v432 = vmax.f32 %v395, 0.0
    %v433 = vmax.f32 %v398, 0.0
    %v434 = vmax.f32 %v401, 0.0
    %v435 = vmax.f32 %v404, 0.0
    %v436 = vmax.f32 %v407, 0.0
    %v437 = vmax.f32 %v410, 0.0
    %v438 = vmax.f32 %v413, 0.0
    %v439 = vmax.f32 %v416, 0.0
    %v440 = vmax.f32 %v419, 0.0
    %v441 = vmax.f32 %v422, 0.0
    %v442 = vmax.f32 %v425, 0.0
    %v443 = vld [vmem:[%s3] sm:$0xff]
    %v444 = vld [vmem:[%s3 + $0x8] sm:$0xff]
    %v445 = vld [vmem:[%s3 + $0x10] sm:$0xff]
    %v446 = vld [vmem:[%s3 + $0x18] sm:$0xff]
    %v447 = vld [vmem:[%s3 + $0x20] sm:$0xff]
    %v448 = vld [vmem:[%s3 + $0x28] sm:$0xff]
    %v449 = vld [vmem:[%s3 + $0x30] sm:$0xff]
    %v450 = vld [vmem:[%s3 + $0x38] sm:$0xff]
    %v451 = vld [vmem:[%s3 + $0x40] sm:$0xff]
    %v452 = vld [vmem:[%s3 + $0x48] sm:$0xff]
    %v453 = vld [vmem:[%s3 + $0x50] sm:$0xff]
    %v454 = vld [vmem:[%s3 + $0x58] sm:$0xff]
    %v455 = vld [vmem:[%s3 + $0x60] sm:$0xff]
    %v456 = vld [vmem:[%s3 + $0x68] sm:$0xff]
    %v457 = vld [vmem:[%s3 + $0x70] sm:$0xff]
    %v458 = vld [vmem:[%s3 + $0x78] sm:$0xff]
    %v459 = vld [vmem:[%s4] sm:$0xff]
    %v460 = vld [vmem:[%s4 + $0x8] sm:$0xff]
    %v461 = vld [vmem:[%s4 + $0x10] sm:$0xff]
    %v462 = vld [vmem:[%s4 + $0x18] sm:$0xff]
    %v463 = vld [vmem:[%s4 + $0x20] sm:$0xff]
    %v464 = vld [vmem:[%s4 + $0x28] sm:$0xff]
    %v465 = vld [vmem:[%s4 + $0x30] sm:$0xff]
    %v466 = vld [vmem:[%s4 + $0x38] sm:$0xff]
    %v467 = vld [vmem:[%s4 + $0x40] sm:$0xff]
    %v468 = vld [vmem:[%s4 + $0x48] sm:$0xff]
    %v469 = vld [vmem:[%s4 + $0x50] sm:$0xff]
    %v470 = vld [vmem:[%s4 + $0x58] sm:$0xff]
    %v471 = vld [vmem:[%s4 + $0x60] sm:$0xff]
    %v472 = vld [vmem:[%s4 + $0x68] sm:$0xff]
    %v473 = vld [vmem:[%s4 + $0x70] sm:$0xff]
    %v474 = vld [vmem:[%s4 + $0x78] sm:$0xff]
    %476 = vset.pattern.permute.xlu0 0
    %477 = vperm.xlu0 %476, %v459
    %v478 = vpop.permute.xlu0 %477
    %481 = vset.pattern.permute.xlu0 0
    %482 = vperm.xlu0 %481, %v460
    %v483 = vpop.permute.xlu0 %482
    %486 = vset.pattern.permute.xlu0 0
    %487 = vperm.xlu0 %486, %v461
    %v488 = vpop.permute.xlu0 %487
    %491 = vset.pattern.permute.xlu0 0
    %492 = vperm.xlu0 %491, %v462
    %v493 = vpop.permute.xlu0 %492
    %496 = vset.pattern.permute.xlu0 0
    %497 = vperm.xlu0 %496, %v463
    %v498 = vpop.permute.xlu0 %497
    %501 = vset.pattern.permute.xlu0 0
    %502 = vperm.xlu0 %501, %v464
    %v503 = vpop.permute.xlu0 %502
    %506 = vset.pattern.permute.xlu0 0
    %507 = vperm.xlu0 %506, %v465
    %v508 = vpop.permute.xlu0 %507
    %511 = vset.pattern.permute.xlu0 0
    %512 = vperm.xlu0 %511, %v466
    %v513 = vpop.permute.xlu0 %512
    %516 = vset.pattern.permute.xlu0 0
    %517 = vperm.xlu0 %516, %v467
    %v518 = vpop.permute.xlu0 %517
    %521 = vset.pattern.permute.xlu0 0
    %522 = vperm.xlu0 %521, %v468
    %v523 = vpop.permute.xlu0 %522
    %526 = vset.pattern.permute.xlu0 0
    %527 = vperm.xlu0 %526, %v469
    %v528 = vpop.permute.xlu0 %527
    %531 = vset.pattern.permute.xlu0 0
    %532 = vperm.xlu0 %531, %v470
    %v533 = vpop.permute.xlu0 %532
    %536 = vset.pattern.permute.xlu0 0
    %537 = vperm.xlu0 %536, %v471
    %v538 = vpop.permute.xlu0 %537
    %541 = vset.pattern.permute.xlu0 0
    %542 = vperm.xlu0 %541, %v472
    %v543 = vpop.permute.xlu0 %542
    %546 = vset.pattern.permute.xlu0 0
    %547 = vperm.xlu0 %546, %v473
    %v548 = vpop.permute.xlu0 %547
    %551 = vset.pattern.permute.xlu0 0
    %552 = vperm.xlu0 %551, %v474
    %v553 = vpop.permute.xlu0 %552
    %555 = vmatpush.msra.mxu0 %v442
    %556 = vmatpush.msra.mxu0 %v441
    %557 = vmatpush.msra.mxu0 %v440
    %558 = vmatpush.msra.mxu0 %v439
    %559 = vmatpush.msra.mxu0 %v438
    %560 = vmatpush.msra.mxu0 %v437
    %561 = vmatpush.msra.mxu0 %v436
    %562 = vmatpush.msra.mxu0 %v435
    %563 = vmatpush.msra.mxu0 %v434
    %564 = vmatpush.msra.mxu0 %v433
    %565 = vmatpush.msra.mxu0 %v432
    %566 = vmatpush.msra.mxu0 %v431
    %567 = vmatpush.msra.mxu0 %v430
    %568 = vmatpush.msra.mxu0 %v429
    %569 = vmatpush.msra.mxu0 %v428
    %570 = vmatpush.msra.mxu0 %v427
    %571 = vmatmul.f32.gmra.mxu0 %v443
    %v572 = vpop.f32.mrf.mxu0
    %v573 = vadd.f32 %v478, %v572
    %574 = vmatmul.f32.gmra.mxu0 %v444
    %v575 = vpop.f32.mrf.mxu0
    %v576 = vadd.f32 %v483, %v575
    %577 = vmatmul.f32.gmra.mxu0 %v445
    %v578 = vpop.f32.mrf.mxu0
    %v579 = vadd.f32 %v488, %v578
    %580 = vmatmul.f32.gmra.mxu0 %v446
    %v581 = vpop.f32.mrf.mxu0
    %v582 = vadd.f32 %v493, %v581
    %583 = vmatmul.f32.gmra.mxu0 %v447
    %v584 = vpop.f32.mrf.mxu0
    %v585 = vadd.f32 %v498, %v584
    %586 = vmatmul.f32.gmra.mxu0 %v448
    %v587 = vpop.f32.mrf.mxu0
    %v588 = vadd.f32 %v503, %v587
    %589 = vmatmul.f32.gmra.mxu0 %v449
    %v590 = vpop.f32.mrf.mxu0
    %v591 = vadd.f32 %v508, %v590
    %592 = vmatmul.f32.gmra.mxu0 %v450
    %v593 = vpop.f32.mrf.mxu0
    %v594 = vadd.f32 %v513, %v593
    %595 = vmatmul.f32.gmra.mxu0 %v451
    %v596 = vpop.f32.mrf.mxu0
    %v597 = vadd.f32 %v518, %v596
    %598 = vmatmul.f32.gmra.mxu0 %v452
    %v599 = vpop.f32.mrf.mxu0
    %v600 = vadd.f32 %v523, %v599
    %601 = vmatmul.f32.gmra.mxu0 %v453
    %v602 = vpop.f32.mrf.mxu0
    %v603 = vadd.f32 %v528, %v602
    %604 = vmatmul.f32.gmra.mxu0 %v454
    %v605 = vpop.f32.mrf.mxu0
    %v606 = vadd.f32 %v533, %v605
    %607 = vmatmul.f32.gmra.mxu0 %v455
    %v608 = vpop.f32.mrf.mxu0
    %v609 = vadd.f32 %v538, %v608
    %610 = vmatmul.f32.gmra.mxu0 %v456
    %v611 = vpop.f32.mrf.mxu0
    %v612 = vadd.f32 %v543, %v611
    %613 = vmatmul.f32.gmra.mxu0 %v457
    %v614 = vpop.f32.mrf.mxu0
    %v615 = vadd.f32 %v548, %v614
    %616 = vmatmul.f32.gmra.mxu0 %v458
    %v617 = vpop.f32.mrf.mxu0
    %v618 = vadd.f32 %v553, %v617
    %619 = vdwg.mxu0
    %v620 = vmax.f32 %v573, 0.0
    %v621 = vmax.f32 %v576, 0.0
    %v622 = vmax.f32 %v579, 0.0
    %v623 = vmax.f32 %v582, 0.0
    %v624 = vmax.f32 %v585, 0.0
    %v625 = vmax.f32 %v588, 0.0
    %v626 = vmax.f32 %v591, 0.0
    %v627 = vmax.f32 %v594, 0.0
    %v628 = vmax.f32 %v597, 0.0
    %v629 = vmax.f32 %v600, 0.0
    %v630 = vmax.f32 %v603, 0.0
    %v631 = vmax.f32 %v606, 0.0
    %v632 = vmax.f32 %v609, 0.0
    %v633 = vmax.f32 %v612, 0.0
    %v634 = vmax.f32 %v615, 0.0
    %v635 = vmax.f32 %v618, 0.0
    %v636 = vld [vmem:[%s5] sm:$0xff]
    %v637 = vld [vmem:[%s5 + $0x8] sm:$0xff]
    %v638 = vld [vmem:[%s5 + $0x10] sm:$0xff]
    %v639 = vld [vmem:[%s5 + $0x18] sm:$0xff]
    %v640 = vld [vmem:[%s5 + $0x20] sm:$0xff]
    %v641 = vld [vmem:[%s5 + $0x28] sm:$0xff]
    %v642 = vld [vmem:[%s5 + $0x30] sm:$0xff]
    %v643 = vld [vmem:[%s5 + $0x38] sm:$0xff]
    %v644 = vld [vmem:[%s5 + $0x40] sm:$0xff]
    %v645 = vld [vmem:[%s5 + $0x48] sm:$0xff]
    %v646 = vld [vmem:[%s5 + $0x50] sm:$0xff]
    %v647 = vld [vmem:[%s5 + $0x58] sm:$0xff]
    %v648 = vld [vmem:[%s5 + $0x60] sm:$0xff]
    %v649 = vld [vmem:[%s5 + $0x68] sm:$0xff]
    %v650 = vld [vmem:[%s5 + $0x70] sm:$0xff]
    %v651 = vld [vmem:[%s5 + $0x78] sm:$0xff]
    %v652 = vld [vmem:[%s6] sm:$0xff]
    %v653 = vld [vmem:[%s6 + $0x8] sm:$0xff]
    %v654 = vld [vmem:[%s6 + $0x10] sm:$0xff]
    %v655 = vld [vmem:[%s6 + $0x18] sm:$0xff]
    %v656 = vld [vmem:[%s6 + $0x20] sm:$0xff]
    %v657 = vld [vmem:[%s6 + $0x28] sm:$0xff]
    %v658 = vld [vmem:[%s6 + $0x30] sm:$0xff]
    %v659 = vld [vmem:[%s6 + $0x38] sm:$0xff]
    %v660 = vld [vmem:[%s6 + $0x40] sm:$0xff]
    %v661 = vld [vmem:[%s6 + $0x48] sm:$0xff]
    %v662 = vld [vmem:[%s6 + $0x50] sm:$0xff]
    %v663 = vld [vmem:[%s6 + $0x58] sm:$0xff]
    %v664 = vld [vmem:[%s6 + $0x60] sm:$0xff]
    %v665 = vld [vmem:[%s6 + $0x68] sm:$0xff]
    %v666 = vld [vmem:[%s6 + $0x70] sm:$0xff]
    %v667 = vld [vmem:[%s6 + $0x78] sm:$0xff]
    %669 = vset.pattern.permute.xlu0 0
    %670 = vperm.xlu0 %669, %v652
    %v671 = vpop.permute.xlu0 %670
    %674 = vset.pattern.permute.xlu0 0
    %675 = vperm.xlu0 %674, %v653
    %v676 = vpop.permute.xlu0 %675
    %679 = vset.pattern.permute.xlu0 0
    %680 = vperm.xlu0 %679, %v654
    %v681 = vpop.permute.xlu0 %680
    %684 = vset.pattern.permute.xlu0 0
    %685 = vperm.xlu0 %684, %v655
    %v686 = vpop.permute.xlu0 %685
    %689 = vset.pattern.permute.xlu0 0
    %690 = vperm.xlu0 %689, %v656
    %v691 = vpop.permute.xlu0 %690
    %694 = vset.pattern.permute.xlu0 0
    %695 = vperm.xlu0 %694, %v657
    %v696 = vpop.permute.xlu0 %695
    %699 = vset.pattern.permute.xlu0 0
    %700 = vperm.xlu0 %699, %v658
    %v701 = vpop.permute.xlu0 %700
    %704 = vset.pattern.permute.xlu0 0
    %705 = vperm.xlu0 %704, %v659
    %v706 = vpop.permute.xlu0 %705
    %709 = vset.pattern.permute.xlu0 0
    %710 = vperm.xlu0 %709, %v660
    %v711 = vpop.permute.xlu0 %710
    %714 = vset.pattern.permute.xlu0 0
    %715 = vperm.xlu0 %714, %v661
    %v716 = vpop.permute.xlu0 %715
    %719 = vset.pattern.permute.xlu0 0
    %720 = vperm.xlu0 %719, %v662
    %v721 = vpop.permute.xlu0 %720
    %724 = vset.pattern.permute.xlu0 0
    %725 = vperm.xlu0 %724, %v663
    %v726 = vpop.permute.xlu0 %725
    %729 = vset.pattern.permute.xlu0 0
    %730 = vperm.xlu0 %729, %v664
    %v731 = vpop.permute.xlu0 %730
    %734 = vset.pattern.permute.xlu0 0
    %735 = vperm.xlu0 %734, %v665
    %v736 = vpop.permute.xlu0 %735
    %739 = vset.pattern.permute.xlu0 0
    %740 = vperm.xlu0 %739, %v666
    %v741 = vpop.permute.xlu0 %740
    %744 = vset.pattern.permute.xlu0 0
    %745 = vperm.xlu0 %744, %v667
    %v746 = vpop.permute.xlu0 %745
    %748 = vmatpush.msra.mxu0 %v635
    %749 = vmatpush.msra.mxu0 %v634
    %750 = vmatpush.msra.mxu0 %v633
    %751 = vmatpush.msra.mxu0 %v632
    %752 = vmatpush.msra.mxu0 %v631
    %753 = vmatpush.msra.mxu0 %v630
    %754 = vmatpush.msra.mxu0 %v629
    %755 = vmatpush.msra.mxu0 %v628
    %756 = vmatpush.msra.mxu0 %v627
    %757 = vmatpush.msra.mxu0 %v626
    %758 = vmatpush.msra.mxu0 %v625
    %759 = vmatpush.msra.mxu0 %v624
    %760 = vmatpush.msra.mxu0 %v623
    %761 = vmatpush.msra.mxu0 %v622
    %762 = vmatpush.msra.mxu0 %v621
    %763 = vmatpush.msra.mxu0 %v620
    %764 = vmatmul.f32.gmra.mxu0 %v636
    %v765 = vpop.f32.mrf.mxu0
    %v766 = vadd.f32 %v671, %v765
    %767 = vmatmul.f32.gmra.mxu0 %v637
    %v768 = vpop.f32.mrf.mxu0
    %v769 = vadd.f32 %v676, %v768
    %770 = vmatmul.f32.gmra.mxu0 %v638
    %v771 = vpop.f32.mrf.mxu0
    %v772 = vadd.f32 %v681, %v771
    %773 = vmatmul.f32.gmra.mxu0 %v639
    %v774 = vpop.f32.mrf.mxu0
    %v775 = vadd.f32 %v686, %v774
    %776 = vmatmul.f32.gmra.mxu0 %v640
    %v777 = vpop.f32.mrf.mxu0
    %v778 = vadd.f32 %v691, %v777
    %779 = vmatmul.f32.gmra.mxu0 %v641
    %v780 = vpop.f32.mrf.mxu0
    %v781 = vadd.f32 %v696, %v780
    %782 = vmatmul.f32.gmra.mxu0 %v642
    %v783 = vpop.f32.mrf.mxu0
    %v784 = vadd.f32 %v701, %v783
    %785 = vmatmul.f32.gmra.mxu0 %v643
    %v786 = vpop.f32.mrf.mxu0
    %v787 = vadd.f32 %v706, %v786
    %788 = vmatmul.f32.gmra.mxu0 %v644
    %v789 = vpop.f32.mrf.mxu0
    %v790 = vadd.f32 %v711, %v789
    %791 = vmatmul.f32.gmra.mxu0 %v645
    %v792 = vpop.f32.mrf.mxu0
    %v793 = vadd.f32 %v716, %v792
    %794 = vmatmul.f32.gmra.mxu0 %v646
    %v795 = vpop.f32.mrf.mxu0
    %v796 = vadd.f32 %v721, %v795
    %797 = vmatmul.f32.gmra.mxu0 %v647
    %v798 = vpop.f32.mrf.mxu0
    %v799 = vadd.f32 %v726, %v798
    %800 = vmatmul.f32.gmra.mxu0 %v648
    %v801 = vpop.f32.mrf.mxu0
    %v802 = vadd.f32 %v731, %v801
    %803 = vmatmul.f32.gmra.mxu0 %v649
    %v804 = vpop.f32.mrf.mxu0
    %v805 = vadd.f32 %v736, %v804
    %806 = vmatmul.f32.gmra.mxu0 %v650
    %v807 = vpop.f32.mrf.mxu0
    %v808 = vadd.f32 %v741, %v807
    %809 = vmatmul.f32.gmra.mxu0 %v651
    %v810 = vpop.f32.mrf.mxu0
    %v811 = vadd.f32 %v746, %v810
    %812 = vdwg.mxu0
    %v813 = vmax.f32 %v766, 0.0
    %v814 = vmax.f32 %v769, 0.0
    %v815 = vmax.f32 %v772, 0.0
    %v816 = vmax.f32 %v775, 0.0
    %v817 = vmax.f32 %v778, 0.0
    %v818 = vmax.f32 %v781, 0.0
    %v819 = vmax.f32 %v784, 0.0
    %v820 = vmax.f32 %v787, 0.0
    %v821 = vmax.f32 %v790, 0.0
    %v822 = vmax.f32 %v793, 0.0
    %v823 = vmax.f32 %v796, 0.0
    %v824 = vmax.f32 %v799, 0.0
    %v825 = vmax.f32 %v802, 0.0
    %v826 = vmax.f32 %v805, 0.0
    %v827 = vmax.f32 %v808, 0.0
    %v828 = vmax.f32 %v811, 0.0
    %v829 = vld [vmem:[%s7] sm:$0xff]
    %v830 = vld [vmem:[%s7 + $0x8] sm:$0xff]
    %v831 = vld [vmem:[%s7 + $0x10] sm:$0xff]
    %v832 = vld [vmem:[%s7 + $0x18] sm:$0xff]
    %v833 = vld [vmem:[%s7 + $0x20] sm:$0xff]
    %v834 = vld [vmem:[%s7 + $0x28] sm:$0xff]
    %v835 = vld [vmem:[%s7 + $0x30] sm:$0xff]
    %v836 = vld [vmem:[%s7 + $0x38] sm:$0xff]
    %v837 = vld [vmem:[%s7 + $0x40] sm:$0xff]
    %v838 = vld [vmem:[%s7 + $0x48] sm:$0xff]
    %v839 = vld [vmem:[%s7 + $0x50] sm:$0xff]
    %v840 = vld [vmem:[%s7 + $0x58] sm:$0xff]
    %v841 = vld [vmem:[%s7 + $0x60] sm:$0xff]
    %v842 = vld [vmem:[%s7 + $0x68] sm:$0xff]
    %v843 = vld [vmem:[%s7 + $0x70] sm:$0xff]
    %v844 = vld [vmem:[%s7 + $0x78] sm:$0xff]
    %846 = vset.pattern.permute.xlu0 0
    %847 = vperm.xlu0 %846, %v829
    %v848 = vpop.permute.xlu0 %847
    %851 = vset.pattern.permute.xlu0 0
    %852 = vperm.xlu0 %851, %v830
    %v853 = vpop.permute.xlu0 %852
    %856 = vset.pattern.permute.xlu0 0
    %857 = vperm.xlu0 %856, %v831
    %v858 = vpop.permute.xlu0 %857
    %861 = vset.pattern.permute.xlu0 0
    %862 = vperm.xlu0 %861, %v832
    %v863 = vpop.permute.xlu0 %862
    %866 = vset.pattern.permute.xlu0 0
    %867 = vperm.xlu0 %866, %v833
    %v868 = vpop.permute.xlu0 %867
    %871 = vset.pattern.permute.xlu0 0
    %872 = vperm.xlu0 %871, %v834
    %v873 = vpop.permute.xlu0 %872
    %876 = vset.pattern.permute.xlu0 0
    %877 = vperm.xlu0 %876, %v835
    %v878 = vpop.permute.xlu0 %877
    %881 = vset.pattern.permute.xlu0 0
    %882 = vperm.xlu0 %881, %v836
    %v883 = vpop.permute.xlu0 %882
    %886 = vset.pattern.permute.xlu0 0
    %887 = vperm.xlu0 %886, %v837
    %v888 = vpop.permute.xlu0 %887
    %891 = vset.pattern.permute.xlu0 0
    %892 = vperm.xlu0 %891, %v838
    %v893 = vpop.permute.xlu0 %892
    %896 = vset.pattern.permute.xlu0 0
    %897 = vperm.xlu0 %896, %v839
    %v898 = vpop.permute.xlu0 %897
    %901 = vset.pattern.permute.xlu0 0
    %902 = vperm.xlu0 %901, %v840
    %v903 = vpop.permute.xlu0 %902
    %906 = vset.pattern.permute.xlu0 0
    %907 = vperm.xlu0 %906, %v841
    %v908 = vpop.permute.xlu0 %907
    %911 = vset.pattern.permute.xlu0 0
    %912 = vperm.xlu0 %911, %v842
    %v913 = vpop.permute.xlu0 %912
    %916 = vset.pattern.permute.xlu0 0
    %917 = vperm.xlu0 %916, %v843
    %v918 = vpop.permute.xlu0 %917
    %921 = vset.pattern.permute.xlu0 0
    %922 = vperm.xlu0 %921, %v844
    %v923 = vpop.permute.xlu0 %922
    %v925 = vmul.f32 %v813, %v848
    %v926 = vmul.f32 %v814, %v853
    %v927 = vmul.f32 %v815, %v858
    %v928 = vmul.f32 %v816, %v863
    %v929 = vmul.f32 %v817, %v868
    %v930 = vmul.f32 %v818, %v873
    %v931 = vmul.f32 %v819, %v878
    %v932 = vmul.f32 %v820, %v883
    %v933 = vmul.f32 %v821, %v888
    %v934 = vmul.f32 %v822, %v893
    %v935 = vmul.f32 %v823, %v898
    %v936 = vmul.f32 %v824, %v903
    %v937 = vmul.f32 %v825, %v908
    %v938 = vmul.f32 %v826, %v913
    %v939 = vmul.f32 %v827, %v918
    %v940 = vmul.f32 %v828, %v923
    %v941 = vadd.f32 %v925, %v926
    %v942 = vadd.f32 %v941, %v927
    %v943 = vadd.f32 %v942, %v928
    %v944 = vadd.f32 %v943, %v929
    %v945 = vadd.f32 %v944, %v930
    %v946 = vadd.f32 %v945, %v931
    %v947 = vadd.f32 %v946, %v932
    %v948 = vadd.f32 %v947, %v933
    %v949 = vadd.f32 %v948, %v934
    %v950 = vadd.f32 %v949, %v935
    %v951 = vadd.f32 %v950, %v936
    %v952 = vadd.f32 %v951, %v937
    %v953 = vadd.f32 %v952, %v938
    %v954 = vadd.f32 %v953, %v939
    %v955 = vadd.f32 %v954, %v940
    %v956 = vrot.slane %v955, 4
    %v957 = vadd.f32 %v955, %v956
    %v958 = vrot.slane %v957, 2
    %v959 = vadd.f32 %v957, %v958
    %v960 = vrot.slane %v959, 1
    %v961 = vadd.f32 %v959, %v960
    %v962 = vld [vmem:[#allocation2] sm:$0x1]
    %964 = vset.pattern.permute.xlu0 0
    %965 = vperm.xlu0 %964, %v962
    %v966 = vpop.permute.xlu0 %965
    %v968 = vperm.slane %v966, 0
    %v969 = vadd.f32 %v961, %v968
    %970 = vst [vmem:[#allocation3] sm:$0x1] %v969
    // Predicated region
    $region38: #{tpu_custom_call.1} parent=1 // pred_check
      _
    $region39: #{tpu_custom_call.1} parent=1 // pred_check_branch
      %972 = sbr.rel (0) target = $region41
    $region40: #{tpu_custom_call.1} parent=1 // pred_region
      %974 = vsyncadd [#allocation4], 0
      %s976 = sshll.u32 [#allocation3], 4
      %s977 = int_to_ptr.vmem [resolvable:$true] %s976
      %s978 = sshll.u32 %s9, 4
      %s979 = int_to_ptr.hbm [resolvable:$true] %s978
      %981 = dma.vmem_to_hbm [thread:$0]  %s977, 16, %s979, [#allocation4]
    $region41: #{tpu_custom_call.1} parent=1 // pred_fallthru
      _
    // Predicated region
    $region42: #{tpu_custom_call.1} parent=1 // pred_check
      _
    $region43: #{tpu_custom_call.1} parent=1 // pred_check_branch
      %983 = sbr.rel (0) target = $region45
    $region44: #{tpu_custom_call.1} parent=1 // pred_region
      %985 = dma.done [#allocation4], 16
    $region45: #{tpu_custom_call.1} parent=1 // pred_fallthru
      _
    %986 = vsyncpa [#allocation4], 1

</llo_original>
